<compile_context>
chip_gen: v7x
topology: tpu7x:2x2x1
jax: 0.10.0
libtpu: 0.0.40
codegen_flags: <defaults>
</compile_context>

<pallas_src>
import functools

import jax
import jax.numpy as jnp
from jax import lax
from jax.experimental import pallas as pl
from jax.experimental.pallas import tpu as pltpu


def _round_up(x, m):
    return (x + m - 1) // m * m


def _bert_output_kernel(h_ref, res_ref, w_ref, b_ref, gamma_ref, beta_ref,
                        o_ref, *, eps):
    # dense: [TM, I] @ [I, H] -> [TM, H] on the MXU (bf16 inputs, f32 accum).
    h = h_ref[...].astype(jnp.bfloat16)               # cast in VMEM, not in HBM
    x = jnp.dot(h, w_ref[...], preferred_element_type=jnp.float32)
    x = x + b_ref[...].astype(jnp.float32)            # bias (1, H) broadcast
    # dropout: inference mode -> identity.
    # TODO(synk): training-mode dropout (pltpu.prng_seed + prng_random_bits mask).
    x = x + res_ref[...].astype(jnp.float32)          # residual add
    # LayerNorm over the hidden (last) axis, f32 math, canonical form.
    mean = jnp.mean(x, axis=-1, keepdims=True)        # (TM, 1)
    msq = jnp.mean(x * x, axis=-1, keepdims=True)     # (TM, 1)
    var = jnp.maximum(msq - mean * mean, 0.0)         # clamp f32 cancellation
    inv = lax.rsqrt(var + eps)                        # (TM, 1), EUP
    xc = x - mean
    o_ref[...] = ((xc * inv) * gamma_ref[...].astype(jnp.float32)
                  + beta_ref[...].astype(jnp.float32)).astype(o_ref.dtype)


def bert_output(hidden_states, input_tensor, w, b, gamma, beta, *,
                eps=1e-12, block_m=1024, out_dtype=None):
    """hidden_states: [B, S, I], input_tensor: [B, S, H] -> [B, S, H].

    w is stored as [I, H] (transposed from PyTorch's Linear weight [H, I]).
    """
    B, S, I = hidden_states.shape
    H = input_tensor.shape[-1]
    M = B * S
    out_dtype = out_dtype or hidden_states.dtype

    # Streamed operands stay in their native dtype (no extra HBM cast pass).
    h2d = hidden_states.reshape(M, I)
    r2d = input_tensor.reshape(M, H)
    # Small, VMEM-resident weight: cast once to bf16 (MXU-native).
    w_bf16 = w if w.dtype == jnp.bfloat16 else w.astype(jnp.bfloat16)
    b2d = b.reshape(1, H)
    g2d = gamma.reshape(1, H)
    beta2d = beta.reshape(1, H)

    # ---- Row tile selection -------------------------------------------------
    TM = max(8, min(block_m, _round_up(M, 8)))
    # Give both TensorCores work on the "parallel" axis (v7x megacore); costs
    # at most one extra ~0.35us grid step on single-TC chips.
    if pl.cdiv(M, TM) < 2 and M > 8:
        TM = _round_up(pl.cdiv(M, 2), 8)

    # ---- VMEM budget (generation-aware) ------------------------------------
    try:
        vmem_cap = int(pltpu.get_tpu_info().vmem_capacity_bytes)
    except Exception:
        vmem_cap = 64 * 1024 * 1024          # conservative: v7x per-TC VMEM
    vmem_budget = max(32 * 1024 * 1024, vmem_cap - 16 * 1024 * 1024)

    h_bytes = jnp.dtype(h2d.dtype).itemsize
    r_bytes = jnp.dtype(r2d.dtype).itemsize
    o_bytes = jnp.dtype(out_dtype).itemsize

    def vmem_needed(tm):
        return (2 * tm * I * h_bytes          # hidden tiles, double-buffered
                + 2 * tm * H * r_bytes        # residual tiles
                + 2 * tm * H * o_bytes        # output tiles
                + 2 * I * H * 2               # resident bf16 weight (<=2 bufs)
                + 6 * H * 4                   # bias / gamma / beta
                + tm * I * 2                  # in-kernel bf16 cast of h tile
                + 3 * tm * H * 4)             # f32 dot acc + LN temporaries

    while TM > 8 and vmem_needed(TM) > vmem_budget:
        TM = max(8, _round_up(TM // 2, 8))

    num_tiles = pl.cdiv(M, TM)
    vmem_limit = int(min(vmem_budget,
                         max(32 * 1024 * 1024, int(1.5 * vmem_needed(TM)))))

    cost = pl.CostEstimate(
        flops=2 * M * I * H,
        transcendentals=M,  # one rsqrt per row
        bytes_accessed=int(h2d.size * h_bytes
                           + r2d.size * r_bytes
                           + w_bf16.size * 2
                           + (b.size + gamma.size + beta.size) * 4
                           + M * H * o_bytes),
    )

    kernel = functools.partial(_bert_output_kernel, eps=eps)

    def _resident_spec(shape, mode):
        idx = lambda i: (0,) * len(shape)
        if mode is None:
            return pl.BlockSpec(shape, idx)
        return pl.BlockSpec(shape, idx, pipeline_mode=mode)

    def build_call(resident_mode):
        return pl.pallas_call(
            kernel,
            out_shape=jax.ShapeDtypeStruct((M, H), out_dtype),
            grid_spec=pltpu.PrefetchScalarGridSpec(
                num_scalar_prefetch=0,
                grid=(num_tiles,),
                in_specs=[
                    pl.BlockSpec((TM, I), lambda i: (i, 0)),     # hidden tile
                    pl.BlockSpec((TM, H), lambda i: (i, 0)),     # residual tile
                    _resident_spec((I, H), resident_mode),       # weight
                    _resident_spec((1, H), resident_mode),       # bias
                    _resident_spec((1, H), resident_mode),       # LN gamma
                    _resident_spec((1, H), resident_mode),       # LN beta
                ],
                out_specs=pl.BlockSpec((TM, H), lambda i: (i, 0)),
            ),
            compiler_params=pltpu.CompilerParams(
                dimension_semantics=("parallel",),
                vmem_limit_bytes=vmem_limit,
            ),
            cost_estimate=cost,
        )

    # Single-buffer the grid-invariant operands; fall back to the default
    # (double-buffered) specs if this JAX version rejects Buffered(1).
    try:
        resident_mode = pl.Buffered(1)
    except Exception:
        resident_mode = None
    try:
        out = build_call(resident_mode)(h2d, r2d, w_bf16, b2d, g2d, beta2d)
    except Exception:
        if resident_mode is None:
            raise
        out = build_call(None)(h2d, r2d, w_bf16, b2d, g2d, beta2d)

    return out.reshape(B, S, H)


if __name__ == "__main__":
    # Small BERT-ish config: batch=2, seq=8, hidden=32, intermediate=128
    B, S, H, I = 2, 8, 32, 128
    eps = 1e-12

    key = jax.random.PRNGKey(0)
    k_h, k_r, k_w, k_b, k_g, k_be = jax.random.split(key, 6)

    hidden_states = jax.random.normal(k_h, (B, S, I), dtype=jnp.float32)
    input_tensor = jax.random.normal(k_r, (B, S, H), dtype=jnp.float32)

    # nn.Linear(intermediate_size, hidden_size): weight [H, I], bias [H].
    # Stored transposed as [I, H] for the kernel's row-major matmul.
    w = jax.random.normal(k_w, (I, H), dtype=jnp.float32) * 0.02
    b = jax.random.normal(k_b, (H,), dtype=jnp.float32) * 0.02
    # nn.LayerNorm(hidden_size): gamma ~1, beta ~0 (perturbed, deterministic).
    gamma = jnp.ones((H,), jnp.float32) + 0.01 * jax.random.normal(k_g, (H,))
    beta = 0.01 * jax.random.normal(k_be, (H,))

    out = bert_output(hidden_states, input_tensor, w, b, gamma, beta, eps=eps)
    out = jax.block_until_ready(out)

    # Pure-JAX reference (matmul operands rounded to bf16 to match the kernel's
    # MXU input precision; accumulation / LayerNorm in f32).
    h_bf = hidden_states.reshape(-1, I).astype(jnp.bfloat16).astype(jnp.float32)
    w_bf = w.astype(jnp.bfloat16).astype(jnp.float32)
    ref = h_bf @ w_bf + b
    ref = ref + input_tensor.reshape(-1, H)
    mu = ref.mean(-1, keepdims=True)
    var = ((ref - mu) ** 2).mean(-1, keepdims=True)
    ref = (ref - mu) / jnp.sqrt(var + eps) * gamma + beta
    ref = ref.reshape(B, S, H)

    assert out.shape == (B, S, H), out.shape
    assert jnp.allclose(out, ref, atol=3e-3, rtol=3e-3), "mismatch vs reference"
    print("KERNEL_OK")
</pallas_src>

<mosaic_0001>
module attributes {stable_mosaic.version = 11 : i64} {
  func.func @_bert_output_kernel(%arg0: i32, %arg1: memref<8x128xf32, #tpu.memory_space<vmem>>, %arg2: memref<8x32xf32, #tpu.memory_space<vmem>>, %arg3: memref<128x32xbf16, #tpu.memory_space<vmem>>, %arg4: memref<1x32xf32, #tpu.memory_space<vmem>>, %arg5: memref<1x32xf32, #tpu.memory_space<vmem>>, %arg6: memref<1x32xf32, #tpu.memory_space<vmem>>, %arg7: memref<8x32xf32, #tpu.memory_space<vmem>>) attributes {dimension_semantics = [#tpu.dimension_semantics<parallel>], iteration_bounds = array<i64: 2>, scalar_prefetch = 0 : i64, scratch_operands = 0 : i64, tpu.core_type = #tpu.core_type<tc>, window_params = [{transform_indices = @transform_0, window_bounds = array<i64: 8, 128>}, {transform_indices = @transform_1, window_bounds = array<i64: 8, 32>}, {pipeline_mode = #tpu.pipeline_mode<synchronous>, transform_indices = @transform_2, window_bounds = array<i64: 128, 32>}, {pipeline_mode = #tpu.pipeline_mode<synchronous>, transform_indices = @transform_3, window_bounds = array<i64: 1, 32>}, {pipeline_mode = #tpu.pipeline_mode<synchronous>, transform_indices = @transform_4, window_bounds = array<i64: 1, 32>}, {pipeline_mode = #tpu.pipeline_mode<synchronous>, transform_indices = @transform_5, window_bounds = array<i64: 1, 32>}, {transform_indices = @transform_6, window_bounds = array<i64: 8, 32>}]} {
    %c0 = arith.constant 0 : index
    %c0_0 = arith.constant 0 : index
    %0 = vector.load %arg1[%c0, %c0_0] : memref<8x128xf32, #tpu.memory_space<vmem>>, vector<8x128xf32>
    %1 = arith.truncf %0 : vector<8x128xf32> to vector<8x128xbf16>
    %c0_1 = arith.constant 0 : index
    %c0_2 = arith.constant 0 : index
    %2 = vector.load %arg3[%c0_1, %c0_2] : memref<128x32xbf16, #tpu.memory_space<vmem>>, vector<128x32xbf16>
    %cst = arith.constant dense<0.000000e+00> : vector<8x32xf32>
    %3 = tpu.matmul %1, %2, %cst {dimension_numbers = #tpu.dot_dimension_numbers<[1], [0], [0], [1], [0, 0, 1, 1], [], []>} : vector<8x128xbf16>, vector<128x32xbf16>, vector<8x32xf32> -> vector<8x32xf32>
    %c0_3 = arith.constant 0 : index
    %c0_4 = arith.constant 0 : index
    %4 = vector.load %arg4[%c0_3, %c0_4] : memref<1x32xf32, #tpu.memory_space<vmem>>, vector<1x32xf32>
    %5 = vector.broadcast %4 : vector<1x32xf32> to vector<8x32xf32>
    %6 = arith.addf %3, %5 : vector<8x32xf32>
    %c0_5 = arith.constant 0 : index
    %c0_6 = arith.constant 0 : index
    %7 = vector.load %arg2[%c0_5, %c0_6] : memref<8x32xf32, #tpu.memory_space<vmem>>, vector<8x32xf32>
    %8 = arith.addf %6, %7 : vector<8x32xf32>
    %cst_7 = arith.constant dense<0.000000e+00> : vector<8xf32>
    %9 = vector.multi_reduction <add>, %8, %cst_7 [1] : vector<8x32xf32> to vector<8xf32>
    %10 = vector.shape_cast %9 : vector<8xf32> to vector<8x1xf32>
    %cst_8 = arith.constant 3.200000e+01 : f32
    %11 = vector.broadcast %cst_8 : f32 to vector<8x1xf32>
    %12 = arith.divf %10, %11 : vector<8x1xf32>
    %13 = arith.mulf %8, %8 : vector<8x32xf32>
    %cst_9 = arith.constant dense<0.000000e+00> : vector<8xf32>
    %14 = vector.multi_reduction <add>, %13, %cst_9 [1] : vector<8x32xf32> to vector<8xf32>
    %15 = vector.shape_cast %14 : vector<8xf32> to vector<8x1xf32>
    %cst_10 = arith.constant 3.200000e+01 : f32
    %16 = vector.broadcast %cst_10 : f32 to vector<8x1xf32>
    %17 = arith.divf %15, %16 : vector<8x1xf32>
    %18 = arith.mulf %12, %12 : vector<8x1xf32>
    %19 = arith.subf %17, %18 : vector<8x1xf32>
    %cst_11 = arith.constant 0.000000e+00 : f32
    %20 = vector.broadcast %cst_11 : f32 to vector<8x1xf32>
    %21 = arith.maximumf %19, %20 : vector<8x1xf32>
    %cst_12 = arith.constant 9.99999996E-13 : f32
    %22 = vector.broadcast %cst_12 : f32 to vector<8x1xf32>
    %23 = arith.addf %21, %22 : vector<8x1xf32>
    %24 = math.rsqrt %23 : vector<8x1xf32>
    %25 = vector.broadcast %12 : vector<8x1xf32> to vector<8x32xf32>
    %26 = arith.subf %8, %25 : vector<8x32xf32>
    %27 = vector.broadcast %24 : vector<8x1xf32> to vector<8x32xf32>
    %28 = arith.mulf %26, %27 : vector<8x32xf32>
    %c0_13 = arith.constant 0 : index
    %c0_14 = arith.constant 0 : index
    %29 = vector.load %arg5[%c0_13, %c0_14] : memref<1x32xf32, #tpu.memory_space<vmem>>, vector<1x32xf32>
    %30 = vector.broadcast %29 : vector<1x32xf32> to vector<8x32xf32>
    %31 = arith.mulf %28, %30 : vector<8x32xf32>
    %c0_15 = arith.constant 0 : index
    %c0_16 = arith.constant 0 : index
    %32 = vector.load %arg6[%c0_15, %c0_16] : memref<1x32xf32, #tpu.memory_space<vmem>>, vector<1x32xf32>
    %33 = vector.broadcast %32 : vector<1x32xf32> to vector<8x32xf32>
    %34 = arith.addf %31, %33 : vector<8x32xf32>
    %c0_17 = arith.constant 0 : index
    %c0_18 = arith.constant 0 : index
    %35 = vector.load %arg7[%c0_17, %c0_18] : memref<8x32xf32, #tpu.memory_space<vmem>>, vector<8x32xf32>
    tpu.vector_store %arg7[%c0_17, %c0_18], %34 {strides = array<i32>} : memref<8x32xf32, #tpu.memory_space<vmem>>, vector<8x32xf32>,
    return
  }
  func.func @transform_0(%arg0: i32) -> (i32, i32) {
    %c0_i32 = arith.constant 0 : i32
    %c0_i32_0 = arith.constant 0 : i32
    return %arg0, %c0_i32 : i32, i32
  }
  func.func @transform_1(%arg0: i32) -> (i32, i32) {
    %c0_i32 = arith.constant 0 : i32
    %c0_i32_0 = arith.constant 0 : i32
    return %arg0, %c0_i32 : i32, i32
  }
  func.func @transform_2(%arg0: i32) -> (i32, i32) {
    %c0_i32 = arith.constant 0 : i32
    %c0_i32_0 = arith.constant 0 : i32
    %c0_i32_1 = arith.constant 0 : i32
    return %c0_i32, %c0_i32_0 : i32, i32
  }
  func.func @transform_3(%arg0: i32) -> (i32, i32) {
    %c0_i32 = arith.constant 0 : i32
    %c0_i32_0 = arith.constant 0 : i32
    %c0_i32_1 = arith.constant 0 : i32
    return %c0_i32, %c0_i32_0 : i32, i32
  }
  func.func @transform_4(%arg0: i32) -> (i32, i32) {
    %c0_i32 = arith.constant 0 : i32
    %c0_i32_0 = arith.constant 0 : i32
    %c0_i32_1 = arith.constant 0 : i32
    return %c0_i32, %c0_i32_0 : i32, i32
  }
  func.func @transform_5(%arg0: i32) -> (i32, i32) {
    %c0_i32 = arith.constant 0 : i32
    %c0_i32_0 = arith.constant 0 : i32
    %c0_i32_1 = arith.constant 0 : i32
    return %c0_i32, %c0_i32_0 : i32, i32
  }
  func.func @transform_6(%arg0: i32) -> (i32, i32) {
    %c0_i32 = arith.constant 0 : i32
    %c0_i32_0 = arith.constant 0 : i32
    return %arg0, %c0_i32 : i32, i32
  }
}

module attributes {stable_mosaic.version = 11 : i64} {
  func.func @_bert_output_kernel(%arg0: i32, %arg1: memref<8x128xf32, #tpu.memory_space<vmem>>, %arg2: memref<8x32xf32, #tpu.memory_space<vmem>>, %arg3: memref<128x32xbf16, #tpu.memory_space<vmem>>, %arg4: memref<1x32xf32, #tpu.memory_space<vmem>>, %arg5: memref<1x32xf32, #tpu.memory_space<vmem>>, %arg6: memref<1x32xf32, #tpu.memory_space<vmem>>, %arg7: memref<8x32xf32, #tpu.memory_space<vmem>>) attributes {dimension_semantics = [#tpu.dimension_semantics<parallel>], iteration_bounds = array<i64: 2>, scalar_prefetch = 0 : i64, scratch_operands = 0 : i64, tpu.core_type = #tpu.core_type<tc>, window_params = [{transform_indices = @transform_0, window_bounds = array<i64: 8, 128>}, {transform_indices = @transform_1, window_bounds = array<i64: 8, 32>}, {pipeline_mode = #tpu.pipeline_mode<synchronous>, transform_indices = @transform_2, window_bounds = array<i64: 128, 32>}, {pipeline_mode = #tpu.pipeline_mode<synchronous>, transform_indices = @transform_3, window_bounds = array<i64: 1, 32>}, {pipeline_mode = #tpu.pipeline_mode<synchronous>, transform_indices = @transform_4, window_bounds = array<i64: 1, 32>}, {pipeline_mode = #tpu.pipeline_mode<synchronous>, transform_indices = @transform_5, window_bounds = array<i64: 1, 32>}, {transform_indices = @transform_6, window_bounds = array<i64: 8, 32>}]} {
    %c0 = arith.constant 0 : index
    %c0_0 = arith.constant 0 : index
    %0 = vector.load %arg1[%c0, %c0_0] : memref<8x128xf32, #tpu.memory_space<vmem>>, vector<8x128xf32>
    %1 = arith.truncf %0 : vector<8x128xf32> to vector<8x128xbf16>
    %c0_1 = arith.constant 0 : index
    %c0_2 = arith.constant 0 : index
    %2 = vector.load %arg3[%c0_1, %c0_2] : memref<128x32xbf16, #tpu.memory_space<vmem>>, vector<128x32xbf16>
    %cst = arith.constant dense<0.000000e+00> : vector<8x32xf32>
    %3 = tpu.matmul %1, %2, %cst {dimension_numbers = #tpu.dot_dimension_numbers<[1], [0], [0], [1], [0, 0, 1, 1], [], []>} : vector<8x128xbf16>, vector<128x32xbf16>, vector<8x32xf32> -> vector<8x32xf32>
    %c0_3 = arith.constant 0 : index
    %c0_4 = arith.constant 0 : index
    %4 = vector.load %arg4[%c0_3, %c0_4] : memref<1x32xf32, #tpu.memory_space<vmem>>, vector<1x32xf32>
    %5 = vector.broadcast %4 : vector<1x32xf32> to vector<8x32xf32>
    %6 = arith.addf %3, %5 : vector<8x32xf32>
    %c0_5 = arith.constant 0 : index
    %c0_6 = arith.constant 0 : index
    %7 = vector.load %arg2[%c0_5, %c0_6] : memref<8x32xf32, #tpu.memory_space<vmem>>, vector<8x32xf32>
    %8 = arith.addf %6, %7 : vector<8x32xf32>
    %cst_7 = arith.constant dense<0.000000e+00> : vector<8xf32>
    %9 = vector.multi_reduction <add>, %8, %cst_7 [1] : vector<8x32xf32> to vector<8xf32>
    %10 = vector.shape_cast %9 : vector<8xf32> to vector<8x1xf32>
    %cst_8 = arith.constant 3.200000e+01 : f32
    %11 = vector.broadcast %cst_8 : f32 to vector<8x1xf32>
    %12 = arith.divf %10, %11 : vector<8x1xf32>
    %13 = arith.mulf %8, %8 : vector<8x32xf32>
    %cst_9 = arith.constant dense<0.000000e+00> : vector<8xf32>
    %14 = vector.multi_reduction <add>, %13, %cst_9 [1] : vector<8x32xf32> to vector<8xf32>
    %15 = vector.shape_cast %14 : vector<8xf32> to vector<8x1xf32>
    %cst_10 = arith.constant 3.200000e+01 : f32
    %16 = vector.broadcast %cst_10 : f32 to vector<8x1xf32>
    %17 = arith.divf %15, %16 : vector<8x1xf32>
    %18 = arith.mulf %12, %12 : vector<8x1xf32>
    %19 = arith.subf %17, %18 : vector<8x1xf32>
    %cst_11 = arith.constant 0.000000e+00 : f32
    %20 = vector.broadcast %cst_11 : f32 to vector<8x1xf32>
    %21 = arith.maximumf %19, %20 : vector<8x1xf32>
    %cst_12 = arith.constant 9.99999996E-13 : f32
    %22 = vector.broadcast %cst_12 : f32 to vector<8x1xf32>
    %23 = arith.addf %21, %22 : vector<8x1xf32>
    %24 = math.rsqrt %23 : vector<8x1xf32>
    %25 = vector.broadcast %12 : vector<8x1xf32> to vector<8x32xf32>
    %26 = arith.subf %8, %25 : vector<8x32xf32>
    %27 = vector.broadcast %24 : vector<8x1xf32> to vector<8x32xf32>
    %28 = arith.mulf %26, %27 : vector<8x32xf32>
    %c0_13 = arith.constant 0 : index
    %c0_14 = arith.constant 0 : index
    %29 = vector.load %arg5[%c0_13, %c0_14] : memref<1x32xf32, #tpu.memory_space<vmem>>, vector<1x32xf32>
    %30 = vector.broadcast %29 : vector<1x32xf32> to vector<8x32xf32>
    %31 = arith.mulf %28, %30 : vector<8x32xf32>
    %c0_15 = arith.constant 0 : index
    %c0_16 = arith.constant 0 : index
    %32 = vector.load %arg6[%c0_15, %c0_16] : memref<1x32xf32, #tpu.memory_space<vmem>>, vector<1x32xf32>
    %33 = vector.broadcast %32 : vector<1x32xf32> to vector<8x32xf32>
    %34 = arith.addf %31, %33 : vector<8x32xf32>
    %c0_17 = arith.constant 0 : index
    %c0_18 = arith.constant 0 : index
    %35 = vector.load %arg7[%c0_17, %c0_18] : memref<8x32xf32, #tpu.memory_space<vmem>>, vector<8x32xf32>
    tpu.vector_store %arg7[%c0_17, %c0_18], %34 {strides = array<i32>} : memref<8x32xf32, #tpu.memory_space<vmem>>, vector<8x32xf32>,
    return
  }
  func.func @transform_0(%arg0: i32) -> (i32, i32) {
    %c0_i32 = arith.constant 0 : i32
    %c0_i32_0 = arith.constant 0 : i32
    return %arg0, %c0_i32 : i32, i32
  }
  func.func @transform_1(%arg0: i32) -> (i32, i32) {
    %c0_i32 = arith.constant 0 : i32
    %c0_i32_0 = arith.constant 0 : i32
    return %arg0, %c0_i32 : i32, i32
  }
  func.func @transform_2(%arg0: i32) -> (i32, i32) {
    %c0_i32 = arith.constant 0 : i32
    %c0_i32_0 = arith.constant 0 : i32
    %c0_i32_1 = arith.constant 0 : i32
    return %c0_i32, %c0_i32_0 : i32, i32
  }
  func.func @transform_3(%arg0: i32) -> (i32, i32) {
    %c0_i32 = arith.constant 0 : i32
    %c0_i32_0 = arith.constant 0 : i32
    %c0_i32_1 = arith.constant 0 : i32
    return %c0_i32, %c0_i32_0 : i32, i32
  }
  func.func @transform_4(%arg0: i32) -> (i32, i32) {
    %c0_i32 = arith.constant 0 : i32
    %c0_i32_0 = arith.constant 0 : i32
    %c0_i32_1 = arith.constant 0 : i32
    return %c0_i32, %c0_i32_0 : i32, i32
  }
  func.func @transform_5(%arg0: i32) -> (i32, i32) {
    %c0_i32 = arith.constant 0 : i32
    %c0_i32_0 = arith.constant 0 : i32
    %c0_i32_1 = arith.constant 0 : i32
    return %c0_i32, %c0_i32_0 : i32, i32
  }
  func.func @transform_6(%arg0: i32) -> (i32, i32) {
    %c0_i32 = arith.constant 0 : i32
    %c0_i32_0 = arith.constant 0 : i32
    return %arg0, %c0_i32 : i32, i32
  }
}

</mosaic_0001>

<llo_original>
// kernel: tpu_custom_call.1
$region0: #{tpu_custom_call.1}
  #allocation0 [shape = 'u32[]', space=smem, size = 0x4, offset = 0x4, fixed_abs, tag = 'smem constant byte address 0x4 - core index']
  #allocation1 [shape = 'u32[144,128]{1,0:T(1,128)}', space=vmem, size = 0x12000, scoped, tag = 'internal scratch']
  %s0 = inlined_call_operand.vmem [shape: f32[16,128], index: 0, kind: input, shape index: {}]
  %s1 = inlined_call_operand.vmem [shape: f32[16,32], index: 1, kind: input, shape index: {}]
  %s2 = inlined_call_operand.vmem [shape: bf16[128,32], index: 2, kind: input, shape index: {}]
  %s3 = inlined_call_operand.vmem [shape: f32[1,32], index: 3, kind: input, shape index: {}]
  %s4 = inlined_call_operand.vmem [shape: f32[1,32], index: 4, kind: input, shape index: {}]
  %s5 = inlined_call_operand.vmem [shape: f32[1,32], index: 5, kind: input, shape index: {}]
  %s6 = inlined_call_operand.hbm [shape: f32[16,32], index: 6, kind: output, shape index: {}]
  %s7 = sld [smem:[#allocation0]]
  $region57: #{tpu_custom_call.1} parent=0
    _
  %s9 = ssub.s32 1, %s7
  %s10 = scalar_select 0, %s9, %s7
  $region1: #{tpu_custom_call.1} parent=0
    #allocation2 [shape = 'u8[8192]{0}', space=vmem, size = 0x2000, scoped, tag = 'output window, operand 0']
    #allocation3 [shape = 's32[2]{0}', space=sflag, size = 0x8, scoped, tag = 'scoped memory for tpu_custom_call.1']
    %11 = vsyncpa [#allocation3], 0
    %s12 = scalar_lea.sflag [#allocation3], 1
    %13 = vsyncpa %s12, 0
    loop: start=0, step=1, limit=4
    $region2: #{tpu_custom_call.1} parent=1 // loop_pre_header
      _
    $region3: #{tpu_custom_call.1} parent=1 // loop_header
      %s15 = sphi 0, %s19
      %p16 = scmp.ge.s32.totalorder %s15, 4
      %s25 = sphi 0, %s27
      %s28 = sphi 0, %s25
      %s29 = sphi 0, %s28
      %s45 = sphi 0, %s29
      %s51 = sphi 0, %s53
      %s54 = sphi 0, %s51
      %s55 = sphi 0, %s54
      %s71 = sphi 0, %s55
      %s75 = sphi 0, %s75
      %s77 = sphi 0, %s75
      %s78 = sphi 0, %s77
      %s92 = sphi 0, %s78
      %s96 = sphi 0, %s96
      %s98 = sphi 0, %s96
      %s99 = sphi 0, %s98
      %s113 = sphi 0, %s99
      %s117 = sphi 0, %s117
      %s119 = sphi 0, %s117
      %s120 = sphi 0, %s119
      %s134 = sphi 0, %s120
      %s138 = sphi 0, %s138
      %s140 = sphi 0, %s138
      %s141 = sphi 0, %s140
      %s155 = sphi 0, %s141
      %s161 = sphi 0, %s163
      %s164 = sphi 0, %s161
      %s165 = sphi 0, %s164
      %s181 = sphi 0, %s165
    $region4: #{tpu_custom_call.1} parent=1 // loop_header_branch
      %18 = sbr.rel (%p16) target = $region8
    $region5: #{tpu_custom_call.1} parent=1 // loop_body
      %s20 = ssub.s32 %s15, 1
      %s21 = ssub.s32 %s15, 2
      %s22 = sadd.s32 %s15, 1
      %s23 = ssub.s32 %s15, %s22
      %p24 = scmp.eq.s32.totalorder %s23, 0
      %s26 = sadd.s32 %s25, 1
      %s27 = scalar_select %p24, %s25, %s26
      %p30 = pneg %p24
      %p31 = scmp.eq.s32.totalorder %s15, 1
      %p32 = por %p30, %p31
      %p33 = scmp.ne.s32.totalorder %s25, %s28
      %p34 = scmp.eq.s32.totalorder %s15, 0
      %p35 = por %p33, %p34
      %p36 = scmp.ne.s32.totalorder %s25, %s28
      %p37 = scmp.eq.s32.totalorder %s20, 1
      %p38 = por %p36, %p37
      %p39 = scmp.ne.s32.totalorder %s28, %s29
      %p40 = scmp.eq.s32.totalorder %s20, 0
      %p41 = por %p39, %p40
      %p42 = scmp.ne.s32.totalorder %s28, %s29
      %p43 = scmp.eq.s32.totalorder %s21, 1
      %p44 = por %p42, %p43
      %p46 = scmp.ne.s32.totalorder %s29, %s45
      %p47 = scmp.eq.s32.totalorder %s21, 0
      %p48 = por %p46, %p47
      %s49 = ssub.s32 %s15, %s22
      %p50 = scmp.eq.s32.totalorder %s49, 0
      %s52 = sadd.s32 %s51, 1
      %s53 = scalar_select %p50, %s51, %s52
      %p56 = pneg %p50
      %p57 = scmp.eq.s32.totalorder %s15, 1
      %p58 = por %p56, %p57
      %p59 = scmp.ne.s32.totalorder %s51, %s54
      %p60 = scmp.eq.s32.totalorder %s15, 0
      %p61 = por %p59, %p60
      %p62 = scmp.ne.s32.totalorder %s51, %s54
      %p63 = scmp.eq.s32.totalorder %s20, 1
      %p64 = por %p62, %p63
      %p65 = scmp.ne.s32.totalorder %s54, %s55
      %p66 = scmp.eq.s32.totalorder %s20, 0
      %p67 = por %p65, %p66
      %p68 = scmp.ne.s32.totalorder %s54, %s55
      %p69 = scmp.eq.s32.totalorder %s21, 1
      %p70 = por %p68, %p69
      %p72 = scmp.ne.s32.totalorder %s55, %s71
      %p73 = scmp.eq.s32.totalorder %s21, 0
      %p74 = por %p72, %p73
      %s76 = sadd.s32 %s75, 1
      %p79 = scmp.eq.s32.totalorder %s15, 1
      %p80 = scmp.ne.s32.totalorder %s75, %s77
      %p81 = scmp.eq.s32.totalorder %s15, 0
      %p82 = por %p80, %p81
      %p83 = scmp.ne.s32.totalorder %s75, %s77
      %p84 = scmp.eq.s32.totalorder %s20, 1
      %p85 = por %p83, %p84
      %p86 = scmp.ne.s32.totalorder %s77, %s78
      %p87 = scmp.eq.s32.totalorder %s20, 0
      %p88 = por %p86, %p87
      %p89 = scmp.ne.s32.totalorder %s77, %s78
      %p90 = scmp.eq.s32.totalorder %s21, 1
      %p91 = por %p89, %p90
      %p93 = scmp.ne.s32.totalorder %s78, %s92
      %p94 = scmp.eq.s32.totalorder %s21, 0
      %p95 = por %p93, %p94
      %s97 = sadd.s32 %s96, 1
      %p100 = scmp.eq.s32.totalorder %s15, 1
      %p101 = scmp.ne.s32.totalorder %s96, %s98
      %p102 = scmp.eq.s32.totalorder %s15, 0
      %p103 = por %p101, %p102
      %p104 = scmp.ne.s32.totalorder %s96, %s98
      %p105 = scmp.eq.s32.totalorder %s20, 1
      %p106 = por %p104, %p105
      %p107 = scmp.ne.s32.totalorder %s98, %s99
      %p108 = scmp.eq.s32.totalorder %s20, 0
      %p109 = por %p107, %p108
      %p110 = scmp.ne.s32.totalorder %s98, %s99
      %p111 = scmp.eq.s32.totalorder %s21, 1
      %p112 = por %p110, %p111
      %p114 = scmp.ne.s32.totalorder %s99, %s113
      %p115 = scmp.eq.s32.totalorder %s21, 0
      %p116 = por %p114, %p115
      %s118 = sadd.s32 %s117, 1
      %p121 = scmp.eq.s32.totalorder %s15, 1
      %p122 = scmp.ne.s32.totalorder %s117, %s119
      %p123 = scmp.eq.s32.totalorder %s15, 0
      %p124 = por %p122, %p123
      %p125 = scmp.ne.s32.totalorder %s117, %s119
      %p126 = scmp.eq.s32.totalorder %s20, 1
      %p127 = por %p125, %p126
      %p128 = scmp.ne.s32.totalorder %s119, %s120
      %p129 = scmp.eq.s32.totalorder %s20, 0
      %p130 = por %p128, %p129
      %p131 = scmp.ne.s32.totalorder %s119, %s120
      %p132 = scmp.eq.s32.totalorder %s21, 1
      %p133 = por %p131, %p132
      %p135 = scmp.ne.s32.totalorder %s120, %s134
      %p136 = scmp.eq.s32.totalorder %s21, 0
      %p137 = por %p135, %p136
      %s139 = sadd.s32 %s138, 1
      %p142 = scmp.eq.s32.totalorder %s15, 1
      %p143 = scmp.ne.s32.totalorder %s138, %s140
      %p144 = scmp.eq.s32.totalorder %s15, 0
      %p145 = por %p143, %p144
      %p146 = scmp.ne.s32.totalorder %s138, %s140
      %p147 = scmp.eq.s32.totalorder %s20, 1
      %p148 = por %p146, %p147
      %p149 = scmp.ne.s32.totalorder %s140, %s141
      %p150 = scmp.eq.s32.totalorder %s20, 0
      %p151 = por %p149, %p150
      %p152 = scmp.ne.s32.totalorder %s140, %s141
      %p153 = scmp.eq.s32.totalorder %s21, 1
      %p154 = por %p152, %p153
      %p156 = scmp.ne.s32.totalorder %s141, %s155
      %p157 = scmp.eq.s32.totalorder %s21, 0
      %p158 = por %p156, %p157
      %s159 = ssub.s32 %s15, %s22
      %p160 = scmp.eq.s32.totalorder %s159, 0
      %s162 = sadd.s32 %s161, 1
      %s163 = scalar_select %p160, %s161, %s162
      %p166 = pneg %p160
      %p167 = scmp.eq.s32.totalorder %s15, 1
      %p168 = por %p166, %p167
      %p169 = scmp.ne.s32.totalorder %s161, %s164
      %p170 = scmp.eq.s32.totalorder %s15, 0
      %p171 = por %p169, %p170
      %p172 = scmp.ne.s32.totalorder %s161, %s164
      %p173 = scmp.eq.s32.totalorder %s20, 1
      %p174 = por %p172, %p173
      %p175 = scmp.ne.s32.totalorder %s164, %s165
      %p176 = scmp.eq.s32.totalorder %s20, 0
      %p177 = por %p175, %p176
      %p178 = scmp.ne.s32.totalorder %s164, %s165
      %p179 = scmp.eq.s32.totalorder %s21, 1
      %p180 = por %p178, %p179
      %p182 = scmp.ne.s32.totalorder %s165, %s181
      %p183 = scmp.eq.s32.totalorder %s21, 0
      %p184 = por %p182, %p183
      %p185 = scmp.le.s32.totalorder 1, %s15
      %p186 = scmp.lt.s32.totalorder %s15, 3
      %p187 = pnand %p185, %p186
      %p188 = pneg %p187
      // Predicated region
      $region9: #{tpu_custom_call.1} parent=5 // pred_check
        _
      $region10: #{tpu_custom_call.1} parent=5 // pred_check_branch
        %190 = sbr.rel (%p187) target = $region12
      $region11: #{tpu_custom_call.1} parent=5 // pred_region
        %s191 = ssub.s32 %s15, 1
        // Predicated region
        $region13: #{tpu_custom_call.1} parent=11 // pred_check
          %p192 = pneg %p88
        $region14: #{tpu_custom_call.1} parent=11 // pred_check_branch
          %194 = sbr.rel (%p192) target = $region16
        $region15: #{tpu_custom_call.1} parent=11 // pred_region
          _
        $region16: #{tpu_custom_call.1} parent=11 // pred_fallthru
          _
        // Predicated region
        $region17: #{tpu_custom_call.1} parent=11 // pred_check
          %p195 = pneg %p109
        $region18: #{tpu_custom_call.1} parent=11 // pred_check_branch
          %197 = sbr.rel (%p195) target = $region20
        $region19: #{tpu_custom_call.1} parent=11 // pred_region
          _
        $region20: #{tpu_custom_call.1} parent=11 // pred_fallthru
          _
        // Predicated region
        $region21: #{tpu_custom_call.1} parent=11 // pred_check
          %p198 = pneg %p130
        $region22: #{tpu_custom_call.1} parent=11 // pred_check_branch
          %200 = sbr.rel (%p198) target = $region24
        $region23: #{tpu_custom_call.1} parent=11 // pred_region
          _
        $region24: #{tpu_custom_call.1} parent=11 // pred_fallthru
          _
        // Predicated region
        $region25: #{tpu_custom_call.1} parent=11 // pred_check
          %p201 = pneg %p151
        $region26: #{tpu_custom_call.1} parent=11 // pred_check_branch
          %203 = sbr.rel (%p201) target = $region28
        $region27: #{tpu_custom_call.1} parent=11 // pred_region
          _
        $region28: #{tpu_custom_call.1} parent=11 // pred_fallthru
          _
      $region12: #{tpu_custom_call.1} parent=5 // pred_fallthru
        _
      %p204 = scmp.lt.s32.totalorder %s15, 2
      // Predicated region
      $region29: #{tpu_custom_call.1} parent=5 // pred_check
        %p205 = pneg %p204
      $region30: #{tpu_custom_call.1} parent=5 // pred_check_branch
        %207 = sbr.rel (%p205) target = $region32
      $region31: #{tpu_custom_call.1} parent=5 // pred_region
        // Predicated region
        $region33: #{tpu_custom_call.1} parent=31 // pred_check
          %p208 = pneg %p35
        $region34: #{tpu_custom_call.1} parent=31 // pred_check_branch
          %210 = sbr.rel (%p208) target = $region36
        $region35: #{tpu_custom_call.1} parent=31 // pred_region
          %p211 = scmp.lt.s32.totalorder %s15, 1
          %s212 = scalar_select %p211, %s15, 1
          %s213 = smul.addr %s212, 8
          %s214 = scalar_lea.vmem %s0, %s213
        $region36: #{tpu_custom_call.1} parent=31 // pred_fallthru
          _
        // Predicated region
        $region37: #{tpu_custom_call.1} parent=31 // pred_check
          %p215 = pneg %p61
        $region38: #{tpu_custom_call.1} parent=31 // pred_check_branch
          %217 = sbr.rel (%p215) target = $region40
        $region39: #{tpu_custom_call.1} parent=31 // pred_region
          %p218 = scmp.lt.s32.totalorder %s15, 1
          %s219 = scalar_select %p218, %s15, 1
          %s220 = smul.addr %s219, 8
          %s221 = scalar_lea.vmem %s1, %s220
        $region40: #{tpu_custom_call.1} parent=31 // pred_fallthru
          _
      $region32: #{tpu_custom_call.1} parent=5 // pred_fallthru
        _
      %p222 = scmp.le.s32.totalorder 1, %s15
      %p223 = scmp.lt.s32.totalorder %s15, 3
      %p224 = pnand %p222, %p223
      %p225 = pneg %p224
      // Predicated region
      $region41: #{tpu_custom_call.1} parent=5 // pred_check
        _
      $region42: #{tpu_custom_call.1} parent=5 // pred_check_branch
        %227 = sbr.rel (%p224) target = $region44
      $region43: #{tpu_custom_call.1} parent=5 // pred_region
        %s228 = ssub.s32 %s15, 1
        %p229 = scmp.lt.s32.totalorder %s20, 1
        %s230 = scalar_select %p229, %s20, 1
        %s231 = smul.addr %s230, 8
        %s232 = scalar_lea.vmem %s0, %s231
        %p233 = pneg %p41
        %p234 = pneg %p38
        %p235 = scmp.lt.s32.totalorder %s20, 1
        %s236 = scalar_select %p235, %s20, 1
        %s237 = smul.addr %s236, 8
        %s238 = scalar_lea.vmem %s1, %s237
        %p239 = pneg %p67
        %p240 = pneg %p64
        %p241 = pneg %p88
        %p242 = pneg %p85
        %p243 = pneg %p109
        %p244 = pneg %p106
        %p245 = pneg %p130
        %p246 = pneg %p127
        %p247 = pneg %p151
        %p248 = pneg %p148
        %p249 = pneg %p177
        %p250 = pneg %p174
        %s251 = sand.u32 %s164, 1
        %s252 = scalar_lea.sflag [#allocation3], %s251
        %s253 = sand.u32 %s164, 1
        %s254 = smul.addr %s253, 8
        %s255 = scalar_lea.vmem [#allocation2], %s254
        %p256 = scmp.lt.s32.totalorder %s20, 1
        %s257 = scalar_select %p256, %s20, 1
        %s258 = smul.addr %s257, 8
        %s259 = scalar_lea.vmem %s0, %s258
        %p260 = scmp.lt.s32.totalorder %s20, 1
        %s261 = scalar_select %p260, %s20, 1
        %s262 = smul.addr %s261, 8
        %s263 = scalar_lea.vmem %s1, %s262
        %v265 = vld [vmem:[%s259] sm:$0xff]
        %v266 = vpack.c.bf16 %v265, %v265
        %v267 = vld [vmem:[%s2] sm:$0xf]
        %v268 = vld [vmem:[%s2 + $0x4] sm:$0xf]
        %v269 = vld [vmem:[%s2 + $0x8] sm:$0xf]
        %v270 = vld [vmem:[%s2 + $0xc] sm:$0xf]
        %v271 = vld [vmem:[%s2 + $0x10] sm:$0xf]
        %v272 = vld [vmem:[%s2 + $0x14] sm:$0xf]
        %v273 = vld [vmem:[%s2 + $0x18] sm:$0xf]
        %v274 = vld [vmem:[%s2 + $0x1c] sm:$0xf]
        %v275 = vld [vmem:[%s2 + $0x20] sm:$0xf]
        %v276 = vld [vmem:[%s2 + $0x24] sm:$0xf]
        %v277 = vld [vmem:[%s2 + $0x28] sm:$0xf]
        %v278 = vld [vmem:[%s2 + $0x2c] sm:$0xf]
        %v279 = vld [vmem:[%s2 + $0x30] sm:$0xf]
        %v280 = vld [vmem:[%s2 + $0x34] sm:$0xf]
        %v281 = vld [vmem:[%s2 + $0x38] sm:$0xf]
        %v282 = vld [vmem:[%s2 + $0x3c] sm:$0xf]
        %v283 = vld [vmem:[%s3] sm:$0x1]
        %v285 = vlaneseq
        %v286 = vshrl.u32 %v285, 7
        %v287 = vsub.s32 0, %v286
        %v288 = vrot.slane %v283, %v287
        %v306 = vunpack.c.l.b16 %v267
        %v307 = vunpack.c.l.b16 %v268
        %v308 = vunpack.c.l.b16 %v269
        %v309 = vunpack.c.l.b16 %v270
        %v310 = vunpack.c.l.b16 %v271
        %v311 = vunpack.c.l.b16 %v272
        %v312 = vunpack.c.l.b16 %v273
        %v313 = vunpack.c.l.b16 %v274
        %v314 = vunpack.c.l.b16 %v275
        %v315 = vunpack.c.l.b16 %v276
        %v316 = vunpack.c.l.b16 %v277
        %v317 = vunpack.c.l.b16 %v278
        %v318 = vunpack.c.l.b16 %v279
        %v319 = vunpack.c.l.b16 %v280
        %v320 = vunpack.c.l.b16 %v281
        %v321 = vunpack.c.l.b16 %v282
        %v322 = vpack.c.b16 %v307, %v306
        %v323 = vpack.c.b16 %v309, %v308
        %v324 = vpack.c.b16 %v311, %v310
        %v325 = vpack.c.b16 %v313, %v312
        %v326 = vpack.c.b16 %v315, %v314
        %v327 = vpack.c.b16 %v317, %v316
        %v328 = vpack.c.b16 %v319, %v318
        %v329 = vpack.c.b16 %v321, %v320
        %338 = vmatprep.subr.bf16.mxu0 0
        %339 = vmatpush1.bf16.msra.mxu0 %v322
        %340 = vmatprep.subr.bf16.mxu0 0
        %341 = vmatpush1.bf16.msra.mxu0 %v323
        %342 = vmatprep.subr.bf16.mxu0 0
        %343 = vmatpush1.bf16.msra.mxu0 %v324
        %344 = vmatprep.subr.bf16.mxu0 0
        %345 = vmatpush1.bf16.msra.mxu0 %v325
        %346 = vmatprep.subr.bf16.mxu0 0
        %347 = vmatpush1.bf16.msra.mxu0 %v326
        %348 = vmatprep.subr.bf16.mxu0 0
        %349 = vmatpush1.bf16.msra.mxu0 %v327
        %350 = vmatprep.subr.bf16.mxu0 0
        %351 = vmatpush1.bf16.msra.mxu0 %v328
        %352 = vmatprep.subr.bf16.mxu0 0
        %353 = vmatpush1.bf16.msra.mxu0 %v329
        %354 = vmatprep.subr.bf16.mxu0 0
        %355 = vmatpush1.bf16.msra.mxu0 0
        %356 = vmatprep.subr.bf16.mxu0 0
        %357 = vmatpush1.bf16.msra.mxu0 0
        %358 = vmatprep.subr.bf16.mxu0 0
        %359 = vmatpush1.bf16.msra.mxu0 0
        %360 = vmatprep.subr.bf16.mxu0 0
        %361 = vmatpush1.bf16.msra.mxu0 0
        %362 = vmatprep.subr.bf16.mxu0 0
        %363 = vmatpush1.bf16.msra.mxu0 0
        %364 = vmatprep.subr.bf16.mxu0 0
        %365 = vmatpush1.bf16.msra.mxu0 0
        %366 = vmatprep.subr.bf16.mxu0 0
        %367 = vmatpush1.bf16.msra.mxu0 0
        %368 = vmatprep.subr.bf16.mxu0 0
        %369 = vmatpush1.bf16.msra.mxu0 0
        %370 = vmatprep.mubr.bf16.mxu0 0
        %371 = vmatmul.mubr.bf16.gmra.mrb[0].mxu0 %v266
        %v372 = vpop.f32.mrb[0].mxu0
        %v373 = vadd.f32 %v288, %v372
        %v374 = vpop.f32.mrb[0].mxu0
        %v375 = vpop.f32.mrb[0].mxu0
        %v376 = vpop.f32.mrb[0].mxu0
        %377 = vdwg.mxu0
        %v378 = vld [vmem:[%s263] sm:$0xff]
        %v379 = vadd.f32 %v373, %v378
        %vm380 = vcmask 261120
        %v381 = vsel %vm380, %v379, 0.0
        %382 = vadd.xlane.f32.xlu0 %v381
        %v383 = vpop.xlane.xlu0 %382
        %v384 = vrcp.pop 32.0
        %v385 = vmul.f32 %v383, %v384
        %v386 = vmul.f32 %v379, %v379
        %v387 = vsel %vm380, %v386, 0.0
        %388 = vadd.xlane.f32.xlu0 %v387
        %v389 = vpop.xlane.xlu0 %388
        %v390 = vmul.f32 %v389, %v384
        %v391 = vmul.f32 %v385, %v385
        %v392 = vsub.f32 %v390, %v391
        %v393 = vmax.f32 %v392, 0.0
        %v394 = vadd.f32 %v393, 1e-12
        %v395 = vrsqrt.pop %v394
        %v396 = vsub.f32 %v379, %v385
        %v397 = vmul.f32 %v396, %v395
        %v398 = vld [vmem:[%s4] sm:$0x1]
        %v400 = vlaneseq
        %v401 = vshrl.u32 %v400, 7
        %v402 = vsub.s32 0, %v401
        %v403 = vrot.slane %v398, %v402
        %v405 = vmul.f32 %v397, %v403
        %v406 = vld [vmem:[%s5] sm:$0x1]
        %v408 = vlaneseq
        %v409 = vshrl.u32 %v408, 7
        %v410 = vsub.s32 0, %v409
        %v411 = vrot.slane %v406, %v410
        %v413 = vadd.f32 %v405, %v411
        %414 = vst.msk [vmem:[%s255] sm:$0xff] %vm380, %v413
        %s415 = sand.u32 %s164, 1
        %s416 = scalar_lea.sflag [#allocation3], %s415
        %s417 = sand.u32 %s164, 1
        %s418 = smul.addr %s417, 8
        %s419 = scalar_lea.vmem [#allocation2], %s418
        // Predicated region
        $region45: #{tpu_custom_call.1} parent=43 // pred_check
          %p420 = pneg %p174
        $region46: #{tpu_custom_call.1} parent=43 // pred_check_branch
          %422 = sbr.rel (%p420) target = $region48
        $region47: #{tpu_custom_call.1} parent=43 // pred_region
          %s424 = ssub.s32 128, 128
          %425 = vsyncadd %s416, %s424
          %s426 = smul.addr %s20, 128
          %s427 = scalar_lea.hbm %s6, %s426
          %s429 = sshll.u32 %s419, 4
          %s430 = int_to_ptr.vmem [resolvable:$true] %s429
          %432 = dma.vmem_to_hbm [thread:$0]  %s430, 128, %s427, %s416
        $region48: #{tpu_custom_call.1} parent=43 // pred_fallthru
          _
      $region44: #{tpu_custom_call.1} parent=5 // pred_fallthru
        _
      %p433 = scmp.le.s32.totalorder 2, %s15
      // Predicated region
      $region49: #{tpu_custom_call.1} parent=5 // pred_check
        %p434 = pneg %p433
      $region50: #{tpu_custom_call.1} parent=5 // pred_check_branch
        %436 = sbr.rel (%p434) target = $region52
      $region51: #{tpu_custom_call.1} parent=5 // pred_region
        %s437 = ssub.s32 %s15, 2
        // Predicated region
        $region53: #{tpu_custom_call.1} parent=51 // pred_check
          %p438 = pneg %p180
        $region54: #{tpu_custom_call.1} parent=51 // pred_check_branch
          %440 = sbr.rel (%p438) target = $region56
        $region55: #{tpu_custom_call.1} parent=51 // pred_region
          %s441 = sand.u32 %s165, 1
          %s442 = scalar_lea.sflag [#allocation3], %s441
          %s443 = sand.u32 %s165, 1
          %s444 = smul.addr %s443, 8
          %s445 = scalar_lea.vmem [#allocation2], %s444
          %446 = dma.done %s442, 128
        $region56: #{tpu_custom_call.1} parent=51 // pred_fallthru
          _
      $region52: #{tpu_custom_call.1} parent=5 // pred_fallthru
        _
    $region6: #{tpu_custom_call.1} parent=1 // loop_footer
      %s19 = sadd.s32 1, %s15
    $region7: #{tpu_custom_call.1} parent=1 // loop_footer_branch
      %14 = sbr.rel target = $region3
    $region8: #{tpu_custom_call.1} parent=1 // loop_exit
      _
    %447 = vsyncpa [#allocation3], 1
    %s448 = scalar_lea.sflag [#allocation3], 1
    %449 = vsyncpa %s448, 1

// kernel: tpu_custom_call.1
$region0: #{tpu_custom_call.1}
  #allocation0 [shape = 'u32[]', space=smem, size = 0x4, offset = 0x4, fixed_abs, tag = 'smem constant byte address 0x4 - core index']
  #allocation1 [shape = 'u32[144,128]{1,0:T(1,128)}', space=vmem, size = 0x12000, scoped, tag = 'internal scratch']
  %s0 = inlined_call_operand.vmem [shape: f32[16,128], index: 0, kind: input, shape index: {}]
  %s1 = inlined_call_operand.vmem [shape: f32[16,32], index: 1, kind: input, shape index: {}]
  %s2 = inlined_call_operand.vmem [shape: bf16[128,32], index: 2, kind: input, shape index: {}]
  %s3 = inlined_call_operand.vmem [shape: f32[1,32], index: 3, kind: input, shape index: {}]
  %s4 = inlined_call_operand.vmem [shape: f32[1,32], index: 4, kind: input, shape index: {}]
  %s5 = inlined_call_operand.vmem [shape: f32[1,32], index: 5, kind: input, shape index: {}]
  %s6 = inlined_call_operand.hbm [shape: f32[16,32], index: 6, kind: output, shape index: {}]
  %s7 = sld [smem:[#allocation0]]
  $region57: #{tpu_custom_call.1} parent=0
    _
  %s9 = ssub.s32 1, %s7
  %s10 = scalar_select 0, %s9, %s7
  $region1: #{tpu_custom_call.1} parent=0
    #allocation2 [shape = 'u8[8192]{0}', space=vmem, size = 0x2000, scoped, tag = 'output window, operand 0']
    #allocation3 [shape = 's32[2]{0}', space=sflag, size = 0x8, scoped, tag = 'scoped memory for tpu_custom_call.1']
    %11 = vsyncpa [#allocation3], 0
    %s12 = scalar_lea.sflag [#allocation3], 1
    %13 = vsyncpa %s12, 0
    loop: start=0, step=1, limit=4
    $region2: #{tpu_custom_call.1} parent=1 // loop_pre_header
      _
    $region3: #{tpu_custom_call.1} parent=1 // loop_header
      %s15 = sphi 0, %s19
      %p16 = scmp.ge.s32.totalorder %s15, 4
      %s25 = sphi 0, %s27
      %s28 = sphi 0, %s25
      %s29 = sphi 0, %s28
      %s45 = sphi 0, %s29
      %s51 = sphi 0, %s53
      %s54 = sphi 0, %s51
      %s55 = sphi 0, %s54
      %s71 = sphi 0, %s55
      %s75 = sphi 0, %s75
      %s77 = sphi 0, %s75
      %s78 = sphi 0, %s77
      %s92 = sphi 0, %s78
      %s96 = sphi 0, %s96
      %s98 = sphi 0, %s96
      %s99 = sphi 0, %s98
      %s113 = sphi 0, %s99
      %s117 = sphi 0, %s117
      %s119 = sphi 0, %s117
      %s120 = sphi 0, %s119
      %s134 = sphi 0, %s120
      %s138 = sphi 0, %s138
      %s140 = sphi 0, %s138
      %s141 = sphi 0, %s140
      %s155 = sphi 0, %s141
      %s161 = sphi 0, %s163
      %s164 = sphi 0, %s161
      %s165 = sphi 0, %s164
      %s181 = sphi 0, %s165
    $region4: #{tpu_custom_call.1} parent=1 // loop_header_branch
      %18 = sbr.rel (%p16) target = $region8
    $region5: #{tpu_custom_call.1} parent=1 // loop_body
      %s20 = ssub.s32 %s15, 1
      %s21 = ssub.s32 %s15, 2
      %s22 = sadd.s32 %s15, 1
      %s23 = ssub.s32 %s15, %s22
      %p24 = scmp.eq.s32.totalorder %s23, 0
      %s26 = sadd.s32 %s25, 1
      %s27 = scalar_select %p24, %s25, %s26
      %p30 = pneg %p24
      %p31 = scmp.eq.s32.totalorder %s15, 1
      %p32 = por %p30, %p31
      %p33 = scmp.ne.s32.totalorder %s25, %s28
      %p34 = scmp.eq.s32.totalorder %s15, 0
      %p35 = por %p33, %p34
      %p36 = scmp.ne.s32.totalorder %s25, %s28
      %p37 = scmp.eq.s32.totalorder %s20, 1
      %p38 = por %p36, %p37
      %p39 = scmp.ne.s32.totalorder %s28, %s29
      %p40 = scmp.eq.s32.totalorder %s20, 0
      %p41 = por %p39, %p40
      %p42 = scmp.ne.s32.totalorder %s28, %s29
      %p43 = scmp.eq.s32.totalorder %s21, 1
      %p44 = por %p42, %p43
      %p46 = scmp.ne.s32.totalorder %s29, %s45
      %p47 = scmp.eq.s32.totalorder %s21, 0
      %p48 = por %p46, %p47
      %s49 = ssub.s32 %s15, %s22
      %p50 = scmp.eq.s32.totalorder %s49, 0
      %s52 = sadd.s32 %s51, 1
      %s53 = scalar_select %p50, %s51, %s52
      %p56 = pneg %p50
      %p57 = scmp.eq.s32.totalorder %s15, 1
      %p58 = por %p56, %p57
      %p59 = scmp.ne.s32.totalorder %s51, %s54
      %p60 = scmp.eq.s32.totalorder %s15, 0
      %p61 = por %p59, %p60
      %p62 = scmp.ne.s32.totalorder %s51, %s54
      %p63 = scmp.eq.s32.totalorder %s20, 1
      %p64 = por %p62, %p63
      %p65 = scmp.ne.s32.totalorder %s54, %s55
      %p66 = scmp.eq.s32.totalorder %s20, 0
      %p67 = por %p65, %p66
      %p68 = scmp.ne.s32.totalorder %s54, %s55
      %p69 = scmp.eq.s32.totalorder %s21, 1
      %p70 = por %p68, %p69
      %p72 = scmp.ne.s32.totalorder %s55, %s71
      %p73 = scmp.eq.s32.totalorder %s21, 0
      %p74 = por %p72, %p73
      %s76 = sadd.s32 %s75, 1
      %p79 = scmp.eq.s32.totalorder %s15, 1
      %p80 = scmp.ne.s32.totalorder %s75, %s77
      %p81 = scmp.eq.s32.totalorder %s15, 0
      %p82 = por %p80, %p81
      %p83 = scmp.ne.s32.totalorder %s75, %s77
      %p84 = scmp.eq.s32.totalorder %s20, 1
      %p85 = por %p83, %p84
      %p86 = scmp.ne.s32.totalorder %s77, %s78
      %p87 = scmp.eq.s32.totalorder %s20, 0
      %p88 = por %p86, %p87
      %p89 = scmp.ne.s32.totalorder %s77, %s78
      %p90 = scmp.eq.s32.totalorder %s21, 1
      %p91 = por %p89, %p90
      %p93 = scmp.ne.s32.totalorder %s78, %s92
      %p94 = scmp.eq.s32.totalorder %s21, 0
      %p95 = por %p93, %p94
      %s97 = sadd.s32 %s96, 1
      %p100 = scmp.eq.s32.totalorder %s15, 1
      %p101 = scmp.ne.s32.totalorder %s96, %s98
      %p102 = scmp.eq.s32.totalorder %s15, 0
      %p103 = por %p101, %p102
      %p104 = scmp.ne.s32.totalorder %s96, %s98
      %p105 = scmp.eq.s32.totalorder %s20, 1
      %p106 = por %p104, %p105
      %p107 = scmp.ne.s32.totalorder %s98, %s99
      %p108 = scmp.eq.s32.totalorder %s20, 0
      %p109 = por %p107, %p108
      %p110 = scmp.ne.s32.totalorder %s98, %s99
      %p111 = scmp.eq.s32.totalorder %s21, 1
      %p112 = por %p110, %p111
      %p114 = scmp.ne.s32.totalorder %s99, %s113
      %p115 = scmp.eq.s32.totalorder %s21, 0
      %p116 = por %p114, %p115
      %s118 = sadd.s32 %s117, 1
      %p121 = scmp.eq.s32.totalorder %s15, 1
      %p122 = scmp.ne.s32.totalorder %s117, %s119
      %p123 = scmp.eq.s32.totalorder %s15, 0
      %p124 = por %p122, %p123
      %p125 = scmp.ne.s32.totalorder %s117, %s119
      %p126 = scmp.eq.s32.totalorder %s20, 1
      %p127 = por %p125, %p126
      %p128 = scmp.ne.s32.totalorder %s119, %s120
      %p129 = scmp.eq.s32.totalorder %s20, 0
      %p130 = por %p128, %p129
      %p131 = scmp.ne.s32.totalorder %s119, %s120
      %p132 = scmp.eq.s32.totalorder %s21, 1
      %p133 = por %p131, %p132
      %p135 = scmp.ne.s32.totalorder %s120, %s134
      %p136 = scmp.eq.s32.totalorder %s21, 0
      %p137 = por %p135, %p136
      %s139 = sadd.s32 %s138, 1
      %p142 = scmp.eq.s32.totalorder %s15, 1
      %p143 = scmp.ne.s32.totalorder %s138, %s140
      %p144 = scmp.eq.s32.totalorder %s15, 0
      %p145 = por %p143, %p144
      %p146 = scmp.ne.s32.totalorder %s138, %s140
      %p147 = scmp.eq.s32.totalorder %s20, 1
      %p148 = por %p146, %p147
      %p149 = scmp.ne.s32.totalorder %s140, %s141
      %p150 = scmp.eq.s32.totalorder %s20, 0
      %p151 = por %p149, %p150
      %p152 = scmp.ne.s32.totalorder %s140, %s141
      %p153 = scmp.eq.s32.totalorder %s21, 1
      %p154 = por %p152, %p153
      %p156 = scmp.ne.s32.totalorder %s141, %s155
      %p157 = scmp.eq.s32.totalorder %s21, 0
      %p158 = por %p156, %p157
      %s159 = ssub.s32 %s15, %s22
      %p160 = scmp.eq.s32.totalorder %s159, 0
      %s162 = sadd.s32 %s161, 1
      %s163 = scalar_select %p160, %s161, %s162
      %p166 = pneg %p160
      %p167 = scmp.eq.s32.totalorder %s15, 1
      %p168 = por %p166, %p167
      %p169 = scmp.ne.s32.totalorder %s161, %s164
      %p170 = scmp.eq.s32.totalorder %s15, 0
      %p171 = por %p169, %p170
      %p172 = scmp.ne.s32.totalorder %s161, %s164
      %p173 = scmp.eq.s32.totalorder %s20, 1
      %p174 = por %p172, %p173
      %p175 = scmp.ne.s32.totalorder %s164, %s165
      %p176 = scmp.eq.s32.totalorder %s20, 0
      %p177 = por %p175, %p176
      %p178 = scmp.ne.s32.totalorder %s164, %s165
      %p179 = scmp.eq.s32.totalorder %s21, 1
      %p180 = por %p178, %p179
      %p182 = scmp.ne.s32.totalorder %s165, %s181
      %p183 = scmp.eq.s32.totalorder %s21, 0
      %p184 = por %p182, %p183
      %p185 = scmp.le.s32.totalorder 1, %s15
      %p186 = scmp.lt.s32.totalorder %s15, 3
      %p187 = pnand %p185, %p186
      %p188 = pneg %p187
      // Predicated region
      $region9: #{tpu_custom_call.1} parent=5 // pred_check
        _
      $region10: #{tpu_custom_call.1} parent=5 // pred_check_branch
        %190 = sbr.rel (%p187) target = $region12
      $region11: #{tpu_custom_call.1} parent=5 // pred_region
        %s191 = ssub.s32 %s15, 1
        // Predicated region
        $region13: #{tpu_custom_call.1} parent=11 // pred_check
          %p192 = pneg %p88
        $region14: #{tpu_custom_call.1} parent=11 // pred_check_branch
          %194 = sbr.rel (%p192) target = $region16
        $region15: #{tpu_custom_call.1} parent=11 // pred_region
          _
        $region16: #{tpu_custom_call.1} parent=11 // pred_fallthru
          _
        // Predicated region
        $region17: #{tpu_custom_call.1} parent=11 // pred_check
          %p195 = pneg %p109
        $region18: #{tpu_custom_call.1} parent=11 // pred_check_branch
          %197 = sbr.rel (%p195) target = $region20
        $region19: #{tpu_custom_call.1} parent=11 // pred_region
          _
        $region20: #{tpu_custom_call.1} parent=11 // pred_fallthru
          _
        // Predicated region
        $region21: #{tpu_custom_call.1} parent=11 // pred_check
          %p198 = pneg %p130
        $region22: #{tpu_custom_call.1} parent=11 // pred_check_branch
          %200 = sbr.rel (%p198) target = $region24
        $region23: #{tpu_custom_call.1} parent=11 // pred_region
          _
        $region24: #{tpu_custom_call.1} parent=11 // pred_fallthru
          _
        // Predicated region
        $region25: #{tpu_custom_call.1} parent=11 // pred_check
          %p201 = pneg %p151
        $region26: #{tpu_custom_call.1} parent=11 // pred_check_branch
          %203 = sbr.rel (%p201) target = $region28
        $region27: #{tpu_custom_call.1} parent=11 // pred_region
          _
        $region28: #{tpu_custom_call.1} parent=11 // pred_fallthru
          _
      $region12: #{tpu_custom_call.1} parent=5 // pred_fallthru
        _
      %p204 = scmp.lt.s32.totalorder %s15, 2
      // Predicated region
      $region29: #{tpu_custom_call.1} parent=5 // pred_check
        %p205 = pneg %p204
      $region30: #{tpu_custom_call.1} parent=5 // pred_check_branch
        %207 = sbr.rel (%p205) target = $region32
      $region31: #{tpu_custom_call.1} parent=5 // pred_region
        // Predicated region
        $region33: #{tpu_custom_call.1} parent=31 // pred_check
          %p208 = pneg %p35
        $region34: #{tpu_custom_call.1} parent=31 // pred_check_branch
          %210 = sbr.rel (%p208) target = $region36
        $region35: #{tpu_custom_call.1} parent=31 // pred_region
          %p211 = scmp.lt.s32.totalorder %s15, 1
          %s212 = scalar_select %p211, %s15, 1
          %s213 = smul.addr %s212, 8
          %s214 = scalar_lea.vmem %s0, %s213
        $region36: #{tpu_custom_call.1} parent=31 // pred_fallthru
          _
        // Predicated region
        $region37: #{tpu_custom_call.1} parent=31 // pred_check
          %p215 = pneg %p61
        $region38: #{tpu_custom_call.1} parent=31 // pred_check_branch
          %217 = sbr.rel (%p215) target = $region40
        $region39: #{tpu_custom_call.1} parent=31 // pred_region
          %p218 = scmp.lt.s32.totalorder %s15, 1
          %s219 = scalar_select %p218, %s15, 1
          %s220 = smul.addr %s219, 8
          %s221 = scalar_lea.vmem %s1, %s220
        $region40: #{tpu_custom_call.1} parent=31 // pred_fallthru
          _
      $region32: #{tpu_custom_call.1} parent=5 // pred_fallthru
        _
      %p222 = scmp.le.s32.totalorder 1, %s15
      %p223 = scmp.lt.s32.totalorder %s15, 3
      %p224 = pnand %p222, %p223
      %p225 = pneg %p224
      // Predicated region
      $region41: #{tpu_custom_call.1} parent=5 // pred_check
        _
      $region42: #{tpu_custom_call.1} parent=5 // pred_check_branch
        %227 = sbr.rel (%p224) target = $region44
      $region43: #{tpu_custom_call.1} parent=5 // pred_region
        %s228 = ssub.s32 %s15, 1
        %p229 = scmp.lt.s32.totalorder %s20, 1
        %s230 = scalar_select %p229, %s20, 1
        %s231 = smul.addr %s230, 8
        %s232 = scalar_lea.vmem %s0, %s231
        %p233 = pneg %p41
        %p234 = pneg %p38
        %p235 = scmp.lt.s32.totalorder %s20, 1
        %s236 = scalar_select %p235, %s20, 1
        %s237 = smul.addr %s236, 8
        %s238 = scalar_lea.vmem %s1, %s237
        %p239 = pneg %p67
        %p240 = pneg %p64
        %p241 = pneg %p88
        %p242 = pneg %p85
        %p243 = pneg %p109
        %p244 = pneg %p106
        %p245 = pneg %p130
        %p246 = pneg %p127
        %p247 = pneg %p151
        %p248 = pneg %p148
        %p249 = pneg %p177
        %p250 = pneg %p174
        %s251 = sand.u32 %s164, 1
        %s252 = scalar_lea.sflag [#allocation3], %s251
        %s253 = sand.u32 %s164, 1
        %s254 = smul.addr %s253, 8
        %s255 = scalar_lea.vmem [#allocation2], %s254
        %p256 = scmp.lt.s32.totalorder %s20, 1
        %s257 = scalar_select %p256, %s20, 1
        %s258 = smul.addr %s257, 8
        %s259 = scalar_lea.vmem %s0, %s258
        %p260 = scmp.lt.s32.totalorder %s20, 1
        %s261 = scalar_select %p260, %s20, 1
        %s262 = smul.addr %s261, 8
        %s263 = scalar_lea.vmem %s1, %s262
        %v265 = vld [vmem:[%s259] sm:$0xff]
        %v266 = vpack.c.bf16 %v265, %v265
        %v267 = vld [vmem:[%s2] sm:$0xf]
        %v268 = vld [vmem:[%s2 + $0x4] sm:$0xf]
        %v269 = vld [vmem:[%s2 + $0x8] sm:$0xf]
        %v270 = vld [vmem:[%s2 + $0xc] sm:$0xf]
        %v271 = vld [vmem:[%s2 + $0x10] sm:$0xf]
        %v272 = vld [vmem:[%s2 + $0x14] sm:$0xf]
        %v273 = vld [vmem:[%s2 + $0x18] sm:$0xf]
        %v274 = vld [vmem:[%s2 + $0x1c] sm:$0xf]
        %v275 = vld [vmem:[%s2 + $0x20] sm:$0xf]
        %v276 = vld [vmem:[%s2 + $0x24] sm:$0xf]
        %v277 = vld [vmem:[%s2 + $0x28] sm:$0xf]
        %v278 = vld [vmem:[%s2 + $0x2c] sm:$0xf]
        %v279 = vld [vmem:[%s2 + $0x30] sm:$0xf]
        %v280 = vld [vmem:[%s2 + $0x34] sm:$0xf]
        %v281 = vld [vmem:[%s2 + $0x38] sm:$0xf]
        %v282 = vld [vmem:[%s2 + $0x3c] sm:$0xf]
        %v283 = vld [vmem:[%s3] sm:$0x1]
        %v285 = vlaneseq
        %v286 = vshrl.u32 %v285, 7
        %v287 = vsub.s32 0, %v286
        %v288 = vrot.slane %v283, %v287
        %v306 = vunpack.c.l.b16 %v267
        %v307 = vunpack.c.l.b16 %v268
        %v308 = vunpack.c.l.b16 %v269
        %v309 = vunpack.c.l.b16 %v270
        %v310 = vunpack.c.l.b16 %v271
        %v311 = vunpack.c.l.b16 %v272
        %v312 = vunpack.c.l.b16 %v273
        %v313 = vunpack.c.l.b16 %v274
        %v314 = vunpack.c.l.b16 %v275
        %v315 = vunpack.c.l.b16 %v276
        %v316 = vunpack.c.l.b16 %v277
        %v317 = vunpack.c.l.b16 %v278
        %v318 = vunpack.c.l.b16 %v279
        %v319 = vunpack.c.l.b16 %v280
        %v320 = vunpack.c.l.b16 %v281
        %v321 = vunpack.c.l.b16 %v282
        %v322 = vpack.c.b16 %v307, %v306
        %v323 = vpack.c.b16 %v309, %v308
        %v324 = vpack.c.b16 %v311, %v310
        %v325 = vpack.c.b16 %v313, %v312
        %v326 = vpack.c.b16 %v315, %v314
        %v327 = vpack.c.b16 %v317, %v316
        %v328 = vpack.c.b16 %v319, %v318
        %v329 = vpack.c.b16 %v321, %v320
        %338 = vmatprep.subr.bf16.mxu0 0
        %339 = vmatpush1.bf16.msra.mxu0 %v322
        %340 = vmatprep.subr.bf16.mxu0 0
        %341 = vmatpush1.bf16.msra.mxu0 %v323
        %342 = vmatprep.subr.bf16.mxu0 0
        %343 = vmatpush1.bf16.msra.mxu0 %v324
        %344 = vmatprep.subr.bf16.mxu0 0
        %345 = vmatpush1.bf16.msra.mxu0 %v325
        %346 = vmatprep.subr.bf16.mxu0 0
        %347 = vmatpush1.bf16.msra.mxu0 %v326
        %348 = vmatprep.subr.bf16.mxu0 0
        %349 = vmatpush1.bf16.msra.mxu0 %v327
        %350 = vmatprep.subr.bf16.mxu0 0
        %351 = vmatpush1.bf16.msra.mxu0 %v328
        %352 = vmatprep.subr.bf16.mxu0 0
        %353 = vmatpush1.bf16.msra.mxu0 %v329
        %354 = vmatprep.subr.bf16.mxu0 0
        %355 = vmatpush1.bf16.msra.mxu0 0
        %356 = vmatprep.subr.bf16.mxu0 0
        %357 = vmatpush1.bf16.msra.mxu0 0
        %358 = vmatprep.subr.bf16.mxu0 0
        %359 = vmatpush1.bf16.msra.mxu0 0
        %360 = vmatprep.subr.bf16.mxu0 0
        %361 = vmatpush1.bf16.msra.mxu0 0
        %362 = vmatprep.subr.bf16.mxu0 0
        %363 = vmatpush1.bf16.msra.mxu0 0
        %364 = vmatprep.subr.bf16.mxu0 0
        %365 = vmatpush1.bf16.msra.mxu0 0
        %366 = vmatprep.subr.bf16.mxu0 0
        %367 = vmatpush1.bf16.msra.mxu0 0
        %368 = vmatprep.subr.bf16.mxu0 0
        %369 = vmatpush1.bf16.msra.mxu0 0
        %370 = vmatprep.mubr.bf16.mxu0 0
        %371 = vmatmul.mubr.bf16.gmra.mrb[0].mxu0 %v266
        %v372 = vpop.f32.mrb[0].mxu0
        %v373 = vadd.f32 %v288, %v372
        %v374 = vpop.f32.mrb[0].mxu0
        %v375 = vpop.f32.mrb[0].mxu0
        %v376 = vpop.f32.mrb[0].mxu0
        %377 = vdwg.mxu0
        %v378 = vld [vmem:[%s263] sm:$0xff]
        %v379 = vadd.f32 %v373, %v378
        %vm380 = vcmask 261120
        %v381 = vsel %vm380, %v379, 0.0
        %382 = vadd.xlane.f32.xlu0 %v381
        %v383 = vpop.xlane.xlu0 %382
        %v384 = vrcp.pop 32.0
        %v385 = vmul.f32 %v383, %v384
        %v386 = vmul.f32 %v379, %v379
        %v387 = vsel %vm380, %v386, 0.0
        %388 = vadd.xlane.f32.xlu0 %v387
        %v389 = vpop.xlane.xlu0 %388
        %v390 = vmul.f32 %v389, %v384
        %v391 = vmul.f32 %v385, %v385
        %v392 = vsub.f32 %v390, %v391
        %v393 = vmax.f32 %v392, 0.0
        %v394 = vadd.f32 %v393, 1e-12
        %v395 = vrsqrt.pop %v394
        %v396 = vsub.f32 %v379, %v385
        %v397 = vmul.f32 %v396, %v395
        %v398 = vld [vmem:[%s4] sm:$0x1]
        %v400 = vlaneseq
        %v401 = vshrl.u32 %v400, 7
        %v402 = vsub.s32 0, %v401
        %v403 = vrot.slane %v398, %v402
        %v405 = vmul.f32 %v397, %v403
        %v406 = vld [vmem:[%s5] sm:$0x1]
        %v408 = vlaneseq
        %v409 = vshrl.u32 %v408, 7
        %v410 = vsub.s32 0, %v409
        %v411 = vrot.slane %v406, %v410
        %v413 = vadd.f32 %v405, %v411
        %414 = vst.msk [vmem:[%s255] sm:$0xff] %vm380, %v413
        %s415 = sand.u32 %s164, 1
        %s416 = scalar_lea.sflag [#allocation3], %s415
        %s417 = sand.u32 %s164, 1
        %s418 = smul.addr %s417, 8
        %s419 = scalar_lea.vmem [#allocation2], %s418
        // Predicated region
        $region45: #{tpu_custom_call.1} parent=43 // pred_check
          %p420 = pneg %p174
        $region46: #{tpu_custom_call.1} parent=43 // pred_check_branch
          %422 = sbr.rel (%p420) target = $region48
        $region47: #{tpu_custom_call.1} parent=43 // pred_region
          %s424 = ssub.s32 128, 128
          %425 = vsyncadd %s416, %s424
          %s426 = smul.addr %s20, 128
          %s427 = scalar_lea.hbm %s6, %s426
          %s429 = sshll.u32 %s419, 4
          %s430 = int_to_ptr.vmem [resolvable:$true] %s429
          %432 = dma.vmem_to_hbm [thread:$0]  %s430, 128, %s427, %s416
        $region48: #{tpu_custom_call.1} parent=43 // pred_fallthru
          _
      $region44: #{tpu_custom_call.1} parent=5 // pred_fallthru
        _
      %p433 = scmp.le.s32.totalorder 2, %s15
      // Predicated region
      $region49: #{tpu_custom_call.1} parent=5 // pred_check
        %p434 = pneg %p433
      $region50: #{tpu_custom_call.1} parent=5 // pred_check_branch
        %436 = sbr.rel (%p434) target = $region52
      $region51: #{tpu_custom_call.1} parent=5 // pred_region
        %s437 = ssub.s32 %s15, 2
        // Predicated region
        $region53: #{tpu_custom_call.1} parent=51 // pred_check
          %p438 = pneg %p180
        $region54: #{tpu_custom_call.1} parent=51 // pred_check_branch
          %440 = sbr.rel (%p438) target = $region56
        $region55: #{tpu_custom_call.1} parent=51 // pred_region
          %s441 = sand.u32 %s165, 1
          %s442 = scalar_lea.sflag [#allocation3], %s441
          %s443 = sand.u32 %s165, 1
          %s444 = smul.addr %s443, 8
          %s445 = scalar_lea.vmem [#allocation2], %s444
          %446 = dma.done %s442, 128
        $region56: #{tpu_custom_call.1} parent=51 // pred_fallthru
          _
      $region52: #{tpu_custom_call.1} parent=5 // pred_fallthru
        _
    $region6: #{tpu_custom_call.1} parent=1 // loop_footer
      %s19 = sadd.s32 1, %s15
    $region7: #{tpu_custom_call.1} parent=1 // loop_footer_branch
      %14 = sbr.rel target = $region3
    $region8: #{tpu_custom_call.1} parent=1 // loop_exit
      _
    %447 = vsyncpa [#allocation3], 1
    %s448 = scalar_lea.sflag [#allocation3], 1
    %449 = vsyncpa %s448, 1

</llo_original>
